<compile_context>
chip_gen: v6e
topology: v6e:2x2x1
jax: 0.10.0
libtpu: 0.0.40
codegen_flags: <defaults>
</compile_context>

<pallas_src>
import jax
import jax.numpy as jnp
import numpy as np
from jax.experimental import pallas as pl
from jax.experimental.pallas import tpu as pltpu

# ---- logical model dimensions (match the PyTorch module) --------------------
INPUT_SIZE = 10
HIDDEN = 24          # nn.LSTM hidden_size
FC1 = 16             # fc1 out_features
OUT = 2              # fc2 out_features

# ---- padded / packed TPU layout ---------------------------------------------
LANES = 128
H_PAD = 32           # hidden padded so 4*H_PAD == 128 lanes (one fp32 vreg row)
GATES = 4 * H_PAD    # 128, gate order [i | f | o | g], 32 lanes per gate
B_PAD = 8            # recurrence batch padded to one sublane tile

# parameter-slab row offsets (each section starts on a multiple of 8 rows)
WIH_R0 = 0                       # (INPUT_SIZE, 128) input->gate weights
WHH_R0 = 16                      # (H_PAD, 128)      hidden->gate weights
B_R0 = 48                        # (1, 128)          combined bias b_ih + b_hh
W1_R0 = 56                       # (H_PAD, 128)      fc1 weight (cols >= FC1 zero)
B1_R0 = 88                       # (1, 128)          fc1 bias
W2_R0 = 96                       # (LANES, 128)      fc2 weight (rows >= FC1, cols >= OUT zero)
B2_R0 = W2_R0 + LANES            # (1, 128)          fc2 bias
SLAB_ROWS = B2_R0 + 8            # 232 rows  -> ~116 KiB fp32, one DMA


def lstm_head_kernel(x_ref, slab_ref, out_ref):
    """Fused LSTM recurrence + MLP head.

    x_ref:    (B, T, INPUT_SIZE) fp32, batch-first (like the PyTorch module)
    slab_ref: (SLAB_ROWS, 128)   fp32 packed parameters (see pack_params)
    out_ref:  (B, OUT)           fp32
    """
    B = out_ref.shape[0]
    T = x_ref.shape[1]
    I = x_ref.shape[2]
    f32, bf16 = jnp.float32, jnp.bfloat16

    # ---- single packed-parameter load; static row-slice views ---------------
    wih = slab_ref[WIH_R0:WIH_R0 + I, :].astype(bf16)        # (I, 128)
    whh = slab_ref[WHH_R0:WHH_R0 + H_PAD, :].astype(bf16)    # (32, 128)
    b = slab_ref[B_R0:B_R0 + 1, :]                           # (1, 128) fp32
    w1 = slab_ref[W1_R0:W1_R0 + H_PAD, :].astype(bf16)       # (32, 128)
    b1 = slab_ref[B1_R0:B1_R0 + 1, :]                        # (1, 128)
    w2 = slab_ref[W2_R0:W2_R0 + LANES, :].astype(bf16)       # (128, 128)
    b2 = slab_ref[B2_R0:B2_R0 + 1, :]                        # (1, 128)

    # ---- hoisted input projection for all timesteps (off the serial chain) --
    x = x_ref[...]                                           # (B, T, I) fp32
    if B < B_PAD:                                            # pad batch -> 8 sublanes
        x = jnp.concatenate(
            [x, jnp.zeros((B_PAD - B, T, I), f32)], axis=0)  # (8, T, I)
    x_flat = x.reshape(B_PAD * T, I).astype(bf16)            # batch-major flatten
    gx = jnp.dot(x_flat, wih, preferred_element_type=f32) + b        # (8*T, 128)
    # in-kernel time-major reorder (tiny XLU shuffle, done once):
    # gx[t] is exactly one sublane-aligned (8, 128) vreg.
    gx = jnp.transpose(gx.reshape(B_PAD, T, GATES), (1, 0, 2))       # (T, 8, 128)

    # ---- recurrence: h/c live in vregs across a fully unrolled loop ---------
    # T is small and static; vreg pressure is tiny, so a static unroll is fine
    # (lax.fori_loop(unroll=True) would be equivalent here).
    h = jnp.zeros((B_PAD, H_PAD), f32)
    c = jnp.zeros((B_PAD, H_PAD), f32)
    for t in range(T):
        z = jnp.dot(h.astype(bf16), whh, preferred_element_type=f32) + gx[t]
        tz = jnp.tanh(z)                      # ONE EUP push for all four gates
        s = 0.5 * tz + 0.5                    # sigmoid(z0)=0.5*tanh(z0/2)+0.5
        i_g = s[:, 0 * H_PAD:1 * H_PAD]       # ([i|f|o] weight columns were
        f_g = s[:, 1 * H_PAD:2 * H_PAD]       #  pre-scaled by 0.5 at pack time)
        o_g = s[:, 2 * H_PAD:3 * H_PAD]
        g_g = tz[:, 3 * H_PAD:4 * H_PAD]
        c = f_g * c + i_g * g_g               # padded lanes stay exactly 0
        h = o_g * jnp.tanh(c)                 # second (and last) EUP push

    # ---- MLP head on last hidden state (Dropout = identity at inference) ----
    hid = jnp.maximum(
        jnp.dot(h.astype(bf16), w1, preferred_element_type=f32) + b1, 0.0)   # (8,128)
    out = jnp.dot(hid.astype(bf16), w2, preferred_element_type=f32) + b2     # (8,128)
    out_ref[...] = out[:B, :OUT]


def realistic_lstm_forward(x, param_slab):
    """x: (B, T, INPUT_SIZE) fp32, batch-first. Returns (B, OUT) fp32 logits."""
    B, T, I = x.shape
    assert I == INPUT_SIZE
    # Single gridless TensorCore call: whole working set is ~130 KiB of VMEM,
    # so it is latency-bound, not capacity/bandwidth-bound, on v5e/v6e/v7x.
    # TODO(synk): for B > 8 add a batch grid with dimension_semantics=("parallel",)
    # so v7x's second TensorCore gets its own batch slice.
    assert B <= B_PAD, "pad/shard the batch before calling (see TODO above)"
    return pl.pallas_call(
        lstm_head_kernel,
        out_shape=jax.ShapeDtypeStruct((B, OUT), jnp.float32),
        in_specs=[pl.BlockSpec(memory_space=pltpu.MemorySpace.VMEM),
                  pl.BlockSpec(memory_space=pltpu.MemorySpace.VMEM)],
        out_specs=pl.BlockSpec(memory_space=pltpu.MemorySpace.VMEM),
    )(x, param_slab)


def init_params(key):
    """Logical (unpadded, fp32) parameters with PyTorch-style
    uniform(-1/sqrt(fan), 1/sqrt(fan)) init.  Fused gate layout [i | f | o | g]
    along the last axis (a column permutation of PyTorch's [i,f,g,o] stacking,
    equivalent for a fresh random init).
    # TODO(synk): permute the 4H gate columns/bias if importing real nn.LSTM weights.
    """
    ks = jax.random.split(key, 8)
    k_l = 1.0 / np.sqrt(HIDDEN)
    k_1 = 1.0 / np.sqrt(HIDDEN)
    k_2 = 1.0 / np.sqrt(FC1)
    u = lambda k, shape, lim: jax.random.uniform(k, shape, jnp.float32, -lim, lim)
    b_ih = u(ks[2], (4 * HIDDEN,), k_l)
    b_hh = u(ks[3], (4 * HIDDEN,), k_l)
    return {
        "wih": u(ks[0], (INPUT_SIZE, 4 * HIDDEN), k_l),
        "whh": u(ks[1], (HIDDEN, 4 * HIDDEN), k_l),
        "b": b_ih + b_hh,
        "w1": u(ks[4], (HIDDEN, FC1), k_1),
        "b1": u(ks[5], (FC1,), k_1),
        "w2": u(ks[6], (FC1, OUT), k_2),
        "b2": u(ks[7], (OUT,), k_2),
    }


def pack_params(p):
    """Pack the logical parameters into one lane-padded (SLAB_ROWS, 128) fp32
    slab (single kernel input -> single DMA).  Each gate occupies a 32-lane
    block (first 24 lanes used); the [i|f|o] columns are pre-scaled by 0.5 so
    the kernel evaluates all gates with one tanh.  All padded rows/columns are
    exactly zero, so padded h/c lanes remain zero through the recurrence."""
    slab = np.zeros((SLAB_ROWS, LANES), np.float32)
    wih = np.asarray(p["wih"], np.float32)
    whh = np.asarray(p["whh"], np.float32)
    bb = np.asarray(p["b"], np.float32)
    gate_scale = (0.5, 0.5, 0.5, 1.0)        # i, f, o (sigmoid-via-tanh), g
    for g in range(4):
        src = slice(g * HIDDEN, (g + 1) * HIDDEN)
        dst = slice(g * H_PAD, g * H_PAD + HIDDEN)
        s = gate_scale[g]
        slab[WIH_R0:WIH_R0 + INPUT_SIZE, dst] = s * wih[:, src]
        slab[WHH_R0:WHH_R0 + HIDDEN, dst] = s * whh[:, src]
        slab[B_R0, dst] = s * bb[src]
    slab[W1_R0:W1_R0 + HIDDEN, :FC1] = np.asarray(p["w1"], np.float32)
    slab[B1_R0, :FC1] = np.asarray(p["b1"], np.float32)
    slab[W2_R0:W2_R0 + FC1, :OUT] = np.asarray(p["w2"], np.float32)
    slab[B2_R0, :OUT] = np.asarray(p["b2"], np.float32)
    return jnp.asarray(slab)


def reference_forward(x, p):
    """Pure-JAX fp32 reference replicating nn.LSTM(batch_first) + fc1/ReLU/fc2
    (dropout = identity in eval) with the same fused [i|f|o|g] weight layout."""
    B, T, _ = x.shape
    H = HIDDEN
    h = jnp.zeros((B, H), jnp.float32)
    c = jnp.zeros((B, H), jnp.float32)
    for t in range(T):
        z = x[:, t, :] @ p["wih"] + h @ p["whh"] + p["b"]     # (B, 4H)
        i_g = jax.nn.sigmoid(z[:, 0 * H:1 * H])
        f_g = jax.nn.sigmoid(z[:, 1 * H:2 * H])
        o_g = jax.nn.sigmoid(z[:, 2 * H:3 * H])
        g_g = jnp.tanh(z[:, 3 * H:4 * H])
        c = f_g * c + i_g * g_g
        h = o_g * jnp.tanh(c)
    hid = jnp.maximum(h @ p["w1"] + p["b1"], 0.0)
    return hid @ p["w2"] + p["b2"]


if __name__ == "__main__":
    key = jax.random.PRNGKey(0)
    k_x, k_p = jax.random.split(key)

    B, T = 2, 8
    x = jax.random.normal(k_x, (B, T, INPUT_SIZE), jnp.float32)
    params = init_params(k_p)
    slab = pack_params(params)

    out = jax.block_until_ready(realistic_lstm_forward(x, slab))

    ref = reference_forward(x, params)
    assert out.shape == (B, OUT)
    assert bool(jnp.all(jnp.isfinite(out)))
    # Tolerance covers bf16 MXU operands inside the kernel (gate math,
    # accumulation and the reference are fp32); observed error is O(1e-3).
    assert jnp.allclose(out, ref, rtol=2e-2, atol=2e-2), (out, ref)

    print("KERNEL_OK")
</pallas_src>

<mosaic_0001>
module attributes {stable_mosaic.version = 11 : i64} {
  func.func @lstm_head_kernel(%arg0: memref<2x8x10xf32, #tpu.memory_space<vmem>>, %arg1: memref<232x128xf32, #tpu.memory_space<vmem>>, %arg2: memref<2x2xf32, #tpu.memory_space<vmem>>) attributes {dimension_semantics = [], scalar_prefetch = 0 : i64, scratch_operands = 0 : i64, tpu.core_type = #tpu.core_type<tc>} {
    %c0 = arith.constant 0 : index
    %c0_0 = arith.constant 0 : index
    %0 = vector.load %arg1[%c0, %c0_0] : memref<232x128xf32, #tpu.memory_space<vmem>>, vector<10x128xf32>
    %1 = arith.truncf %0 : vector<10x128xf32> to vector<10x128xbf16>
    %c16 = arith.constant 16 : index
    %c0_1 = arith.constant 0 : index
    %2 = vector.load %arg1[%c16, %c0_1] : memref<232x128xf32, #tpu.memory_space<vmem>>, vector<32x128xf32>
    %3 = arith.truncf %2 : vector<32x128xf32> to vector<32x128xbf16>
    %c48 = arith.constant 48 : index
    %c0_2 = arith.constant 0 : index
    %4 = vector.load %arg1[%c48, %c0_2] : memref<232x128xf32, #tpu.memory_space<vmem>>, vector<1x128xf32>
    %c56 = arith.constant 56 : index
    %c0_3 = arith.constant 0 : index
    %5 = vector.load %arg1[%c56, %c0_3] : memref<232x128xf32, #tpu.memory_space<vmem>>, vector<32x128xf32>
    %6 = arith.truncf %5 : vector<32x128xf32> to vector<32x128xbf16>
    %c88 = arith.constant 88 : index
    %c0_4 = arith.constant 0 : index
    %7 = vector.load %arg1[%c88, %c0_4] : memref<232x128xf32, #tpu.memory_space<vmem>>, vector<1x128xf32>
    %c96 = arith.constant 96 : index
    %c0_5 = arith.constant 0 : index
    %8 = vector.load %arg1[%c96, %c0_5] : memref<232x128xf32, #tpu.memory_space<vmem>>, vector<128x128xf32>
    %9 = arith.truncf %8 : vector<128x128xf32> to vector<128x128xbf16>
    %c224 = arith.constant 224 : index
    %c0_6 = arith.constant 0 : index
    %10 = vector.load %arg1[%c224, %c0_6] : memref<232x128xf32, #tpu.memory_space<vmem>>, vector<1x128xf32>
    %c0_7 = arith.constant 0 : index
    %c0_8 = arith.constant 0 : index
    %c0_9 = arith.constant 0 : index
    %11 = vector.load %arg0[%c0_7, %c0_8, %c0_9] : memref<2x8x10xf32, #tpu.memory_space<vmem>>, vector<2x8x10xf32>
    %cst = arith.constant 0.000000e+00 : f32
    %12 = vector.broadcast %cst : f32 to vector<6x8x10xf32>
    %13 = tpu.concatenate %11, %12 in 0 : vector<2x8x10xf32>, vector<6x8x10xf32> -> vector<8x8x10xf32>
    %14 = vector.shape_cast %13 : vector<8x8x10xf32> to vector<64x10xf32>
    %15 = arith.truncf %14 : vector<64x10xf32> to vector<64x10xbf16>
    %cst_10 = arith.constant dense<0.000000e+00> : vector<64x128xf32>
    %16 = tpu.matmul %15, %1, %cst_10 {dimension_numbers = #tpu.dot_dimension_numbers<[1], [0], [0], [1], [0, 0, 1, 1], [], []>} : vector<64x10xbf16>, vector<10x128xbf16>, vector<64x128xf32> -> vector<64x128xf32>
    %17 = vector.broadcast %4 : vector<1x128xf32> to vector<64x128xf32>
    %18 = arith.addf %16, %17 : vector<64x128xf32>
    %19 = vector.shape_cast %18 : vector<64x128xf32> to vector<8x8x128xf32>
    %20 = tpu.transpose %19, [1, 0, 2] : vector<8x8x128xf32> -> vector<8x8x128xf32>
    %cst_11 = arith.constant 0.000000e+00 : f32
    %21 = vector.broadcast %cst_11 : f32 to vector<8x32xf32>
    %cst_12 = arith.constant 0.000000e+00 : f32
    %22 = vector.broadcast %cst_12 : f32 to vector<8x32xf32>
    %23 = arith.truncf %21 : vector<8x32xf32> to vector<8x32xbf16>
    %cst_13 = arith.constant dense<0.000000e+00> : vector<8x128xf32>
    %24 = tpu.matmul %23, %3, %cst_13 {dimension_numbers = #tpu.dot_dimension_numbers<[1], [0], [0], [1], [0, 0, 1, 1], [], []>} : vector<8x32xbf16>, vector<32x128xbf16>, vector<8x128xf32> -> vector<8x128xf32>
    %25 = vector.extract_strided_slice %20 {offsets = [0, 0, 0], sizes = [1, 8, 128], strides = [1, 1, 1]} : vector<8x8x128xf32> to vector<1x8x128xf32>
    %26 = vector.shape_cast %25 : vector<1x8x128xf32> to vector<8x128xf32>
    %27 = arith.addf %24, %26 : vector<8x128xf32>
    %28 = math.tanh %27 : vector<8x128xf32>
    %cst_14 = arith.constant 5.000000e-01 : f32
    %29 = vector.broadcast %cst_14 : f32 to vector<8x128xf32>
    %30 = arith.mulf %29, %28 : vector<8x128xf32>
    %cst_15 = arith.constant 5.000000e-01 : f32
    %31 = vector.broadcast %cst_15 : f32 to vector<8x128xf32>
    %32 = arith.addf %30, %31 : vector<8x128xf32>
    %33 = vector.extract_strided_slice %32 {offsets = [0, 0], sizes = [8, 32], strides = [1, 1]} : vector<8x128xf32> to vector<8x32xf32>
    %34 = vector.extract_strided_slice %32 {offsets = [0, 32], sizes = [8, 32], strides = [1, 1]} : vector<8x128xf32> to vector<8x32xf32>
    %35 = vector.extract_strided_slice %32 {offsets = [0, 64], sizes = [8, 32], strides = [1, 1]} : vector<8x128xf32> to vector<8x32xf32>
    %36 = vector.extract_strided_slice %28 {offsets = [0, 96], sizes = [8, 32], strides = [1, 1]} : vector<8x128xf32> to vector<8x32xf32>
    %37 = arith.mulf %34, %22 : vector<8x32xf32>
    %38 = arith.mulf %33, %36 : vector<8x32xf32>
    %39 = arith.addf %37, %38 : vector<8x32xf32>
    %40 = math.tanh %39 : vector<8x32xf32>
    %41 = arith.mulf %35, %40 : vector<8x32xf32>
    %42 = arith.truncf %41 : vector<8x32xf32> to vector<8x32xbf16>
    %cst_16 = arith.constant dense<0.000000e+00> : vector<8x128xf32>
    %43 = tpu.matmul %42, %3, %cst_16 {dimension_numbers = #tpu.dot_dimension_numbers<[1], [0], [0], [1], [0, 0, 1, 1], [], []>} : vector<8x32xbf16>, vector<32x128xbf16>, vector<8x128xf32> -> vector<8x128xf32>
    %44 = vector.extract_strided_slice %20 {offsets = [1, 0, 0], sizes = [1, 8, 128], strides = [1, 1, 1]} : vector<8x8x128xf32> to vector<1x8x128xf32>
    %45 = vector.shape_cast %44 : vector<1x8x128xf32> to vector<8x128xf32>
    %46 = arith.addf %43, %45 : vector<8x128xf32>
    %47 = math.tanh %46 : vector<8x128xf32>
    %cst_17 = arith.constant 5.000000e-01 : f32
    %48 = vector.broadcast %cst_17 : f32 to vector<8x128xf32>
    %49 = arith.mulf %48, %47 : vector<8x128xf32>
    %cst_18 = arith.constant 5.000000e-01 : f32
    %50 = vector.broadcast %cst_18 : f32 to vector<8x128xf32>
    %51 = arith.addf %49, %50 : vector<8x128xf32>
    %52 = vector.extract_strided_slice %51 {offsets = [0, 0], sizes = [8, 32], strides = [1, 1]} : vector<8x128xf32> to vector<8x32xf32>
    %53 = vector.extract_strided_slice %51 {offsets = [0, 32], sizes = [8, 32], strides = [1, 1]} : vector<8x128xf32> to vector<8x32xf32>
    %54 = vector.extract_strided_slice %51 {offsets = [0, 64], sizes = [8, 32], strides = [1, 1]} : vector<8x128xf32> to vector<8x32xf32>
    %55 = vector.extract_strided_slice %47 {offsets = [0, 96], sizes = [8, 32], strides = [1, 1]} : vector<8x128xf32> to vector<8x32xf32>
    %56 = arith.mulf %53, %39 : vector<8x32xf32>
    %57 = arith.mulf %52, %55 : vector<8x32xf32>
    %58 = arith.addf %56, %57 : vector<8x32xf32>
    %59 = math.tanh %58 : vector<8x32xf32>
    %60 = arith.mulf %54, %59 : vector<8x32xf32>
    %61 = arith.truncf %60 : vector<8x32xf32> to vector<8x32xbf16>
    %cst_19 = arith.constant dense<0.000000e+00> : vector<8x128xf32>
    %62 = tpu.matmul %61, %3, %cst_19 {dimension_numbers = #tpu.dot_dimension_numbers<[1], [0], [0], [1], [0, 0, 1, 1], [], []>} : vector<8x32xbf16>, vector<32x128xbf16>, vector<8x128xf32> -> vector<8x128xf32>
    %63 = vector.extract_strided_slice %20 {offsets = [2, 0, 0], sizes = [1, 8, 128], strides = [1, 1, 1]} : vector<8x8x128xf32> to vector<1x8x128xf32>
    %64 = vector.shape_cast %63 : vector<1x8x128xf32> to vector<8x128xf32>
    %65 = arith.addf %62, %64 : vector<8x128xf32>
    %66 = math.tanh %65 : vector<8x128xf32>
    %cst_20 = arith.constant 5.000000e-01 : f32
    %67 = vector.broadcast %cst_20 : f32 to vector<8x128xf32>
    %68 = arith.mulf %67, %66 : vector<8x128xf32>
    %cst_21 = arith.constant 5.000000e-01 : f32
    %69 = vector.broadcast %cst_21 : f32 to vector<8x128xf32>
    %70 = arith.addf %68, %69 : vector<8x128xf32>
    %71 = vector.extract_strided_slice %70 {offsets = [0, 0], sizes = [8, 32], strides = [1, 1]} : vector<8x128xf32> to vector<8x32xf32>
    %72 = vector.extract_strided_slice %70 {offsets = [0, 32], sizes = [8, 32], strides = [1, 1]} : vector<8x128xf32> to vector<8x32xf32>
    %73 = vector.extract_strided_slice %70 {offsets = [0, 64], sizes = [8, 32], strides = [1, 1]} : vector<8x128xf32> to vector<8x32xf32>
    %74 = vector.extract_strided_slice %66 {offsets = [0, 96], sizes = [8, 32], strides = [1, 1]} : vector<8x128xf32> to vector<8x32xf32>
    %75 = arith.mulf %72, %58 : vector<8x32xf32>
    %76 = arith.mulf %71, %74 : vector<8x32xf32>
    %77 = arith.addf %75, %76 : vector<8x32xf32>
    %78 = math.tanh %77 : vector<8x32xf32>
    %79 = arith.mulf %73, %78 : vector<8x32xf32>
    %80 = arith.truncf %79 : vector<8x32xf32> to vector<8x32xbf16>
    %cst_22 = arith.constant dense<0.000000e+00> : vector<8x128xf32>
    %81 = tpu.matmul %80, %3, %cst_22 {dimension_numbers = #tpu.dot_dimension_numbers<[1], [0], [0], [1], [0, 0, 1, 1], [], []>} : vector<8x32xbf16>, vector<32x128xbf16>, vector<8x128xf32> -> vector<8x128xf32>
    %82 = vector.extract_strided_slice %20 {offsets = [3, 0, 0], sizes = [1, 8, 128], strides = [1, 1, 1]} : vector<8x8x128xf32> to vector<1x8x128xf32>
    %83 = vector.shape_cast %82 : vector<1x8x128xf32> to vector<8x128xf32>
    %84 = arith.addf %81, %83 : vector<8x128xf32>
    %85 = math.tanh %84 : vector<8x128xf32>
    %cst_23 = arith.constant 5.000000e-01 : f32
    %86 = vector.broadcast %cst_23 : f32 to vector<8x128xf32>
    %87 = arith.mulf %86, %85 : vector<8x128xf32>
    %cst_24 = arith.constant 5.000000e-01 : f32
    %88 = vector.broadcast %cst_24 : f32 to vector<8x128xf32>
    %89 = arith.addf %87, %88 : vector<8x128xf32>
    %90 = vector.extract_strided_slice %89 {offsets = [0, 0], sizes = [8, 32], strides = [1, 1]} : vector<8x128xf32> to vector<8x32xf32>
    %91 = vector.extract_strided_slice %89 {offsets = [0, 32], sizes = [8, 32], strides = [1, 1]} : vector<8x128xf32> to vector<8x32xf32>
    %92 = vector.extract_strided_slice %89 {offsets = [0, 64], sizes = [8, 32], strides = [1, 1]} : vector<8x128xf32> to vector<8x32xf32>
    %93 = vector.extract_strided_slice %85 {offsets = [0, 96], sizes = [8, 32], strides = [1, 1]} : vector<8x128xf32> to vector<8x32xf32>
    %94 = arith.mulf %91, %77 : vector<8x32xf32>
    %95 = arith.mulf %90, %93 : vector<8x32xf32>
    %96 = arith.addf %94, %95 : vector<8x32xf32>
    %97 = math.tanh %96 : vector<8x32xf32>
    %98 = arith.mulf %92, %97 : vector<8x32xf32>
    %99 = arith.truncf %98 : vector<8x32xf32> to vector<8x32xbf16>
    %cst_25 = arith.constant dense<0.000000e+00> : vector<8x128xf32>
    %100 = tpu.matmul %99, %3, %cst_25 {dimension_numbers = #tpu.dot_dimension_numbers<[1], [0], [0], [1], [0, 0, 1, 1], [], []>} : vector<8x32xbf16>, vector<32x128xbf16>, vector<8x128xf32> -> vector<8x128xf32>
    %101 = vector.extract_strided_slice %20 {offsets = [4, 0, 0], sizes = [1, 8, 128], strides = [1, 1, 1]} : vector<8x8x128xf32> to vector<1x8x128xf32>
    %102 = vector.shape_cast %101 : vector<1x8x128xf32> to vector<8x128xf32>
    %103 = arith.addf %100, %102 : vector<8x128xf32>
    %104 = math.tanh %103 : vector<8x128xf32>
    %cst_26 = arith.constant 5.000000e-01 : f32
    %105 = vector.broadcast %cst_26 : f32 to vector<8x128xf32>
    %106 = arith.mulf %105, %104 : vector<8x128xf32>
    %cst_27 = arith.constant 5.000000e-01 : f32
    %107 = vector.broadcast %cst_27 : f32 to vector<8x128xf32>
    %108 = arith.addf %106, %107 : vector<8x128xf32>
    %109 = vector.extract_strided_slice %108 {offsets = [0, 0], sizes = [8, 32], strides = [1, 1]} : vector<8x128xf32> to vector<8x32xf32>
    %110 = vector.extract_strided_slice %108 {offsets = [0, 32], sizes = [8, 32], strides = [1, 1]} : vector<8x128xf32> to vector<8x32xf32>
    %111 = vector.extract_strided_slice %108 {offsets = [0, 64], sizes = [8, 32], strides = [1, 1]} : vector<8x128xf32> to vector<8x32xf32>
    %112 = vector.extract_strided_slice %104 {offsets = [0, 96], sizes = [8, 32], strides = [1, 1]} : vector<8x128xf32> to vector<8x32xf32>
    %113 = arith.mulf %110, %96 : vector<8x32xf32>
    %114 = arith.mulf %109, %112 : vector<8x32xf32>
    %115 = arith.addf %113, %114 : vector<8x32xf32>
    %116 = math.tanh %115 : vector<8x32xf32>
    %117 = arith.mulf %111, %116 : vector<8x32xf32>
    %118 = arith.truncf %117 : vector<8x32xf32> to vector<8x32xbf16>
    %cst_28 = arith.constant dense<0.000000e+00> : vector<8x128xf32>
    %119 = tpu.matmul %118, %3, %cst_28 {dimension_numbers = #tpu.dot_dimension_numbers<[1], [0], [0], [1], [0, 0, 1, 1], [], []>} : vector<8x32xbf16>, vector<32x128xbf16>, vector<8x128xf32> -> vector<8x128xf32>
    %120 = vector.extract_strided_slice %20 {offsets = [5, 0, 0], sizes = [1, 8, 128], strides = [1, 1, 1]} : vector<8x8x128xf32> to vector<1x8x128xf32>
    %121 = vector.shape_cast %120 : vector<1x8x128xf32> to vector<8x128xf32>
    %122 = arith.addf %119, %121 : vector<8x128xf32>
    %123 = math.tanh %122 : vector<8x128xf32>
    %cst_29 = arith.constant 5.000000e-01 : f32
    %124 = vector.broadcast %cst_29 : f32 to vector<8x128xf32>
    %125 = arith.mulf %124, %123 : vector<8x128xf32>
    %cst_30 = arith.constant 5.000000e-01 : f32
    %126 = vector.broadcast %cst_30 : f32 to vector<8x128xf32>
    %127 = arith.addf %125, %126 : vector<8x128xf32>
    %128 = vector.extract_strided_slice %127 {offsets = [0, 0], sizes = [8, 32], strides = [1, 1]} : vector<8x128xf32> to vector<8x32xf32>
    %129 = vector.extract_strided_slice %127 {offsets = [0, 32], sizes = [8, 32], strides = [1, 1]} : vector<8x128xf32> to vector<8x32xf32>
    %130 = vector.extract_strided_slice %127 {offsets = [0, 64], sizes = [8, 32], strides = [1, 1]} : vector<8x128xf32> to vector<8x32xf32>
    %131 = vector.extract_strided_slice %123 {offsets = [0, 96], sizes = [8, 32], strides = [1, 1]} : vector<8x128xf32> to vector<8x32xf32>
    %132 = arith.mulf %129, %115 : vector<8x32xf32>
    %133 = arith.mulf %128, %131 : vector<8x32xf32>
    %134 = arith.addf %132, %133 : vector<8x32xf32>
    %135 = math.tanh %134 : vector<8x32xf32>
    %136 = arith.mulf %130, %135 : vector<8x32xf32>
    %137 = arith.truncf %136 : vector<8x32xf32> to vector<8x32xbf16>
    %cst_31 = arith.constant dense<0.000000e+00> : vector<8x128xf32>
    %138 = tpu.matmul %137, %3, %cst_31 {dimension_numbers = #tpu.dot_dimension_numbers<[1], [0], [0], [1], [0, 0, 1, 1], [], []>} : vector<8x32xbf16>, vector<32x128xbf16>, vector<8x128xf32> -> vector<8x128xf32>
    %139 = vector.extract_strided_slice %20 {offsets = [6, 0, 0], sizes = [1, 8, 128], strides = [1, 1, 1]} : vector<8x8x128xf32> to vector<1x8x128xf32>
    %140 = vector.shape_cast %139 : vector<1x8x128xf32> to vector<8x128xf32>
    %141 = arith.addf %138, %140 : vector<8x128xf32>
    %142 = math.tanh %141 : vector<8x128xf32>
    %cst_32 = arith.constant 5.000000e-01 : f32
    %143 = vector.broadcast %cst_32 : f32 to vector<8x128xf32>
    %144 = arith.mulf %143, %142 : vector<8x128xf32>
    %cst_33 = arith.constant 5.000000e-01 : f32
    %145 = vector.broadcast %cst_33 : f32 to vector<8x128xf32>
    %146 = arith.addf %144, %145 : vector<8x128xf32>
    %147 = vector.extract_strided_slice %146 {offsets = [0, 0], sizes = [8, 32], strides = [1, 1]} : vector<8x128xf32> to vector<8x32xf32>
    %148 = vector.extract_strided_slice %146 {offsets = [0, 32], sizes = [8, 32], strides = [1, 1]} : vector<8x128xf32> to vector<8x32xf32>
    %149 = vector.extract_strided_slice %146 {offsets = [0, 64], sizes = [8, 32], strides = [1, 1]} : vector<8x128xf32> to vector<8x32xf32>
    %150 = vector.extract_strided_slice %142 {offsets = [0, 96], sizes = [8, 32], strides = [1, 1]} : vector<8x128xf32> to vector<8x32xf32>
    %151 = arith.mulf %148, %134 : vector<8x32xf32>
    %152 = arith.mulf %147, %150 : vector<8x32xf32>
    %153 = arith.addf %151, %152 : vector<8x32xf32>
    %154 = math.tanh %153 : vector<8x32xf32>
    %155 = arith.mulf %149, %154 : vector<8x32xf32>
    %156 = arith.truncf %155 : vector<8x32xf32> to vector<8x32xbf16>
    %cst_34 = arith.constant dense<0.000000e+00> : vector<8x128xf32>
    %157 = tpu.matmul %156, %3, %cst_34 {dimension_numbers = #tpu.dot_dimension_numbers<[1], [0], [0], [1], [0, 0, 1, 1], [], []>} : vector<8x32xbf16>, vector<32x128xbf16>, vector<8x128xf32> -> vector<8x128xf32>
    %158 = vector.extract_strided_slice %20 {offsets = [7, 0, 0], sizes = [1, 8, 128], strides = [1, 1, 1]} : vector<8x8x128xf32> to vector<1x8x128xf32>
    %159 = vector.shape_cast %158 : vector<1x8x128xf32> to vector<8x128xf32>
    %160 = arith.addf %157, %159 : vector<8x128xf32>
    %161 = math.tanh %160 : vector<8x128xf32>
    %cst_35 = arith.constant 5.000000e-01 : f32
    %162 = vector.broadcast %cst_35 : f32 to vector<8x128xf32>
    %163 = arith.mulf %162, %161 : vector<8x128xf32>
    %cst_36 = arith.constant 5.000000e-01 : f32
    %164 = vector.broadcast %cst_36 : f32 to vector<8x128xf32>
    %165 = arith.addf %163, %164 : vector<8x128xf32>
    %166 = vector.extract_strided_slice %165 {offsets = [0, 0], sizes = [8, 32], strides = [1, 1]} : vector<8x128xf32> to vector<8x32xf32>
    %167 = vector.extract_strided_slice %165 {offsets = [0, 32], sizes = [8, 32], strides = [1, 1]} : vector<8x128xf32> to vector<8x32xf32>
    %168 = vector.extract_strided_slice %165 {offsets = [0, 64], sizes = [8, 32], strides = [1, 1]} : vector<8x128xf32> to vector<8x32xf32>
    %169 = vector.extract_strided_slice %161 {offsets = [0, 96], sizes = [8, 32], strides = [1, 1]} : vector<8x128xf32> to vector<8x32xf32>
    %170 = arith.mulf %167, %153 : vector<8x32xf32>
    %171 = arith.mulf %166, %169 : vector<8x32xf32>
    %172 = arith.addf %170, %171 : vector<8x32xf32>
    %173 = math.tanh %172 : vector<8x32xf32>
    %174 = arith.mulf %168, %173 : vector<8x32xf32>
    %175 = arith.truncf %174 : vector<8x32xf32> to vector<8x32xbf16>
    %cst_37 = arith.constant dense<0.000000e+00> : vector<8x128xf32>
    %176 = tpu.matmul %175, %6, %cst_37 {dimension_numbers = #tpu.dot_dimension_numbers<[1], [0], [0], [1], [0, 0, 1, 1], [], []>} : vector<8x32xbf16>, vector<32x128xbf16>, vector<8x128xf32> -> vector<8x128xf32>
    %177 = vector.broadcast %7 : vector<1x128xf32> to vector<8x128xf32>
    %178 = arith.addf %176, %177 : vector<8x128xf32>
    %cst_38 = arith.constant 0.000000e+00 : f32
    %179 = vector.broadcast %cst_38 : f32 to vector<8x128xf32>
    %180 = arith.maximumf %178, %179 : vector<8x128xf32>
    %181 = arith.truncf %180 : vector<8x128xf32> to vector<8x128xbf16>
    %cst_39 = arith.constant dense<0.000000e+00> : vector<8x128xf32>
    %182 = tpu.matmul %181, %9, %cst_39 {dimension_numbers = #tpu.dot_dimension_numbers<[1], [0], [0], [1], [0, 0, 1, 1], [], []>} : vector<8x128xbf16>, vector<128x128xbf16>, vector<8x128xf32> -> vector<8x128xf32>
    %183 = vector.broadcast %10 : vector<1x128xf32> to vector<8x128xf32>
    %184 = arith.addf %182, %183 : vector<8x128xf32>
    %185 = vector.extract_strided_slice %184 {offsets = [0, 0], sizes = [2, 2], strides = [1, 1]} : vector<8x128xf32> to vector<2x2xf32>
    %c0_40 = arith.constant 0 : index
    %c0_41 = arith.constant 0 : index
    %186 = vector.load %arg2[%c0_40, %c0_41] : memref<2x2xf32, #tpu.memory_space<vmem>>, vector<2x2xf32>
    tpu.vector_store %arg2[%c0_40, %c0_41], %185 {strides = array<i32>} : memref<2x2xf32, #tpu.memory_space<vmem>>, vector<2x2xf32>,
    return
  }
}

</mosaic_0001>

<llo_original>
// kernel: tpu_custom_call.1
$region0: #{tpu_custom_call.1}
  #allocation0 [shape = 'u32[]', space=smem, size = 0x4, offset = 0x4, fixed_abs, tag = 'smem constant byte address 0x4 - core index']
  #allocation1 [shape = 'u32[144,128]{1,0:T(1,128)}', space=vmem, size = 0x12000, scoped, tag = 'internal scratch']
  %s0 = inlined_call_operand.hbm [shape: f32[2,8,10], index: 0, kind: input, shape index: {}]
  %s1 = inlined_call_operand.hbm [shape: f32[232,128], index: 1, kind: input, shape index: {}]
  %s2 = inlined_call_operand.hbm [shape: f32[2,2], index: 2, kind: output, shape index: {}]
  %s3 = sld [smem:[#allocation0]]
  $region26: #{tpu_custom_call.1} parent=0
    _
  %s5 = ssub.s32 1, %s3
  %s6 = scalar_select 0, %s5, %s3
  $region1: #{tpu_custom_call.1} parent=0
    #allocation2 [shape = 'u8[8192]{0}', space=vmem, size = 0x2000, scoped, tag = 'input window, operand 0, single buffered']
    #allocation3 [shape = 's32[1]{0}', space=sflag, size = 0x4, scoped, tag = 'scoped memory for tpu_custom_call.1']
    #allocation4 [shape = 's32[1]{0}', space=sflag, size = 0x4, scoped, tag = 'scoped memory for tpu_custom_call.1']
    #allocation5 [shape = 'u8[118784]{0}', space=vmem, size = 0x1d000, scoped, tag = 'input window, operand 1, single buffered']
    #allocation6 [shape = 's32[1]{0}', space=sflag, size = 0x4, scoped, tag = 'scoped memory for tpu_custom_call.1']
    #allocation7 [shape = 'u8[1024]{0}', space=vmem, size = 0x400, scoped, tag = 'output window, operand 0, single buffered']
    %7 = vsyncpa [#allocation3], 0
    %8 = vsyncpa [#allocation6], 0
    %9 = vsyncpa [#allocation4], 0
    // Predicated region
    $region2: #{tpu_custom_call.1} parent=1 // pred_check
      _
    $region3: #{tpu_custom_call.1} parent=1 // pred_check_branch
      %11 = sbr.rel (0) target = $region5
    $region4: #{tpu_custom_call.1} parent=1 // pred_region
      %s13 = ssub.s32 256, 256
      %14 = vsyncadd [#allocation3], %s13
      %s15 = sshll.u32 [#allocation2], 4
      %s16 = int_to_ptr.vmem [resolvable:$true] %s15
      %21 = dma.hbm_to_vmem [thread:$0]  %s0, 256, %s16, [#allocation3], 128, 128, 8
    $region5: #{tpu_custom_call.1} parent=1 // pred_fallthru
      _
    // Predicated region
    $region6: #{tpu_custom_call.1} parent=1 // pred_check
      _
    $region7: #{tpu_custom_call.1} parent=1 // pred_check_branch
      %23 = sbr.rel (0) target = $region9
    $region8: #{tpu_custom_call.1} parent=1 // pred_region
      %s25 = ssub.s32 3712, 3712
      %26 = vsyncadd [#allocation6], %s25
      %s27 = sshll.u32 [#allocation5], 4
      %s28 = int_to_ptr.vmem [resolvable:$true] %s27
      %33 = dma.hbm_to_vmem [thread:$0]  %s1, 3712, %s28, [#allocation6], 128, 128, 8
    $region9: #{tpu_custom_call.1} parent=1 // pred_fallthru
      _
    // Predicated region
    $region10: #{tpu_custom_call.1} parent=1 // pred_check
      _
    $region11: #{tpu_custom_call.1} parent=1 // pred_check_branch
      %35 = sbr.rel (0) target = $region13
    $region12: #{tpu_custom_call.1} parent=1 // pred_region
      %36 = dma.done [#allocation3], 256
    $region13: #{tpu_custom_call.1} parent=1 // pred_fallthru
      _
    // Predicated region
    $region14: #{tpu_custom_call.1} parent=1 // pred_check
      _
    $region15: #{tpu_custom_call.1} parent=1 // pred_check_branch
      %38 = sbr.rel (0) target = $region17
    $region16: #{tpu_custom_call.1} parent=1 // pred_region
      %39 = dma.done [#allocation6], 3712
    $region17: #{tpu_custom_call.1} parent=1 // pred_fallthru
      _
    %v41 = vld [vmem:[#allocation5] sm:$0xff]
    %v42 = vld [vmem:[#allocation5 + $0x8] sm:$0x3]
    %v43 = vpack.c.bf16 %v42, %v41
    %v44 = vld [vmem:[#allocation5 + $0x10] sm:$0xff]
    %v45 = vld [vmem:[#allocation5 + $0x18] sm:$0xff]
    %v46 = vld [vmem:[#allocation5 + $0x20] sm:$0xff]
    %v47 = vld [vmem:[#allocation5 + $0x28] sm:$0xff]
    %v48 = vpack.c.bf16 %v45, %v44
    %v49 = vpack.c.bf16 %v47, %v46
    %v50 = vld [vmem:[#allocation5 + $0x30] sm:$0x1]
    %v51 = vld [vmem:[#allocation5 + $0x38] sm:$0xff]
    %v52 = vld [vmem:[#allocation5 + $0x40] sm:$0xff]
    %v53 = vld [vmem:[#allocation5 + $0x48] sm:$0xff]
    %v54 = vld [vmem:[#allocation5 + $0x50] sm:$0xff]
    %v55 = vpack.c.bf16 %v52, %v51
    %v56 = vpack.c.bf16 %v54, %v53
    %v57 = vld [vmem:[#allocation5 + $0x58] sm:$0x1]
    %v58 = vld [vmem:[#allocation5 + $0x60] sm:$0xff]
    %v59 = vld [vmem:[#allocation5 + $0x68] sm:$0xff]
    %v60 = vld [vmem:[#allocation5 + $0x70] sm:$0xff]
    %v61 = vld [vmem:[#allocation5 + $0x78] sm:$0xff]
    %v62 = vld [vmem:[#allocation5 + $0x80] sm:$0xff]
    %v63 = vld [vmem:[#allocation5 + $0x88] sm:$0xff]
    %v64 = vld [vmem:[#allocation5 + $0x90] sm:$0xff]
    %v65 = vld [vmem:[#allocation5 + $0x98] sm:$0xff]
    %v66 = vld [vmem:[#allocation5 + $0xa0] sm:$0xff]
    %v67 = vld [vmem:[#allocation5 + $0xa8] sm:$0xff]
    %v68 = vld [vmem:[#allocation5 + $0xb0] sm:$0xff]
    %v69 = vld [vmem:[#allocation5 + $0xb8] sm:$0xff]
    %v70 = vld [vmem:[#allocation5 + $0xc0] sm:$0xff]
    %v71 = vld [vmem:[#allocation5 + $0xc8] sm:$0xff]
    %v72 = vld [vmem:[#allocation5 + $0xd0] sm:$0xff]
    %v73 = vld [vmem:[#allocation5 + $0xd8] sm:$0xff]
    %v74 = vpack.c.bf16 %v59, %v58
    %v75 = vpack.c.bf16 %v61, %v60
    %v76 = vpack.c.bf16 %v63, %v62
    %v77 = vpack.c.bf16 %v65, %v64
    %v78 = vpack.c.bf16 %v67, %v66
    %v79 = vpack.c.bf16 %v69, %v68
    %v80 = vpack.c.bf16 %v71, %v70
    %v81 = vpack.c.bf16 %v73, %v72
    %v82 = vld [vmem:[#allocation5 + $0xe0] sm:$0x1]
    %v83 = vld [vmem:[#allocation2] sm:$0xff]
    %v84 = vld [vmem:[#allocation2 + $0x8] sm:$0xff]
    %v85 = vpack.c.bf16 %v84, %v83
    %v86 = vpack.c.bf16 0.0, 0.0
    %v87 = vlaneseq
    %v88 = vshrl.u32 %v87, 7
    %v89 = vsub.s32 0, %v88
    %v90 = vrot.slane %v50, %v89
    %vm91 = vcmask 80896
    %v93 = vsel %vm91, %v85, 0
    %v96 = vsel %vm91, %v86, 0
    %vm98 = vcmask 1044480
    %v100 = vsel %vm98, %v43, 0
    %102 = vmatprep.subr.bf16.mxu0 0
    %103 = vmatpush1.bf16.msra.mxu0 0
    %104 = vmatprep.subr.bf16.mxu0 0
    %105 = vmatpush1.bf16.msra.mxu0 0
    %106 = vmatprep.subr.bf16.mxu0 0
    %107 = vmatpush1.bf16.msra.mxu0 0
    %108 = vmatprep.subr.bf16.mxu0 0
    %109 = vmatpush1.bf16.msra.mxu0 0
    %110 = vmatprep.subr.bf16.mxu0 0
    %111 = vmatpush1.bf16.msra.mxu0 0
    %112 = vmatprep.subr.bf16.mxu0 0
    %113 = vmatpush1.bf16.msra.mxu0 0
    %114 = vmatprep.subr.bf16.mxu0 0
    %115 = vmatpush1.bf16.msra.mxu0 0
    %116 = vmatprep.subr.bf16.mxu0 0
    %117 = vmatpush1.bf16.msra.mxu0 %v100
    %118 = vmatprep.subr.bf16.mxu0 0
    %119 = vmatpush2.bf16.msra.mxu0 0
    %120 = vmatprep.subr.bf16.mxu0 0
    %121 = vmatpush2.bf16.msra.mxu0 0
    %122 = vmatprep.subr.bf16.mxu0 0
    %123 = vmatpush2.bf16.msra.mxu0 0
    %124 = vmatprep.subr.bf16.mxu0 0
    %125 = vmatpush2.bf16.msra.mxu0 0
    %126 = vmatprep.subr.bf16.mxu0 0
    %127 = vmatpush2.bf16.msra.mxu0 0
    %128 = vmatprep.subr.bf16.mxu0 0
    %129 = vmatpush2.bf16.msra.mxu0 0
    %130 = vmatprep.subr.bf16.mxu0 0
    %131 = vmatpush2.bf16.msra.mxu0 0
    %132 = vmatprep.subr.bf16.mxu0 0
    %133 = vmatpush2.bf16.msra.mxu0 0
    %134 = vmatprep.mubr.bf16.mxu0 0
    %135 = vmatmul.mubr.bf16.gmra.mxu0 %v93
    %v136 = vpop.f32.mrf.mxu0
    %v137 = vadd.f32 %v90, %v136
    %v138 = vpop.f32.mrf.mxu0
    %v139 = vpop.f32.mrf.mxu0
    %v140 = vadd.f32 %v90, %v139
    %v141 = vpop.f32.mrf.mxu0
    %142 = vmatprep.mubr.bf16.mxu0 0
    %143 = vmatmul.mubr.bf16.gmra.mxu0 %v96
    %v144 = vpop.f32.mrf.mxu0
    %v145 = vadd.f32 %v90, %v144
    %v146 = vpop.f32.mrf.mxu0
    %v147 = vpop.f32.mrf.mxu0
    %v148 = vadd.f32 %v90, %v147
    %v149 = vpop.f32.mrf.mxu0
    %150 = vmatprep.mubr.bf16.mxu0 0
    %151 = vmatmul.mubr.bf16.gmra.mxu0 %v96
    %v152 = vpop.f32.mrf.mxu0
    %v153 = vadd.f32 %v90, %v152
    %v154 = vpop.f32.mrf.mxu0
    %v155 = vpop.f32.mrf.mxu0
    %v156 = vadd.f32 %v90, %v155
    %v157 = vpop.f32.mrf.mxu0
    %158 = vmatprep.mubr.bf16.mxu0 0
    %159 = vmatmul.mubr.bf16.gmra.mxu0 %v96
    %v160 = vpop.f32.mrf.mxu0
    %v161 = vadd.f32 %v90, %v160
    %v162 = vpop.f32.mrf.mxu0
    %v163 = vpop.f32.mrf.mxu0
    %v164 = vadd.f32 %v90, %v163
    %v165 = vpop.f32.mrf.mxu0
    %166 = vdwg.mxu0
    %v167 = vcombine.low %v137, %v145
    %v168 = vcombine.high %v137, %v145
    %v170 = vunpack.c.l.s4 1983009808
    %v171 = vunpack.c.0.s8 %v170
    %v172 = vlaneseq
    %v173 = vshrl.u32 %v172, 7
    %v174 = vsub.s32 %v171, %v173
    %v175 = vrot.slane %v167, %v174
    %v177 = vunpack.c.l.s4 1983009808
    %v178 = vunpack.c.0.s8 %v177
    %v179 = vlaneseq
    %v180 = vshrl.u32 %v179, 7
    %v181 = vsub.s32 %v178, %v180
    %v182 = vrot.slane %v168, %v181
    %v183 = vcombine.low %v140, %v148
    %v184 = vcombine.high %v140, %v148
    %v186 = vunpack.c.l.s4 1983009808
    %v187 = vunpack.c.0.s8 %v186
    %v188 = vlaneseq
    %v189 = vshrl.u32 %v188, 7
    %v190 = vsub.s32 %v187, %v189
    %v191 = vrot.slane %v183, %v190
    %v193 = vunpack.c.l.s4 1983009808
    %v194 = vunpack.c.0.s8 %v193
    %v195 = vlaneseq
    %v196 = vshrl.u32 %v195, 7
    %v197 = vsub.s32 %v194, %v196
    %v198 = vrot.slane %v184, %v197
    %v199 = vcombine.low %v153, %v161
    %v200 = vcombine.high %v153, %v161
    %v202 = vunpack.c.l.s4 1983009808
    %v203 = vunpack.c.0.s8 %v202
    %v204 = vlaneseq
    %v205 = vshrl.u32 %v204, 7
    %v206 = vsub.s32 %v203, %v205
    %v207 = vrot.slane %v199, %v206
    %v209 = vunpack.c.l.s4 1983009808
    %v210 = vunpack.c.0.s8 %v209
    %v211 = vlaneseq
    %v212 = vshrl.u32 %v211, 7
    %v213 = vsub.s32 %v210, %v212
    %v214 = vrot.slane %v200, %v213
    %v215 = vcombine.low %v156, %v164
    %v216 = vcombine.high %v156, %v164
    %v218 = vunpack.c.l.s4 1983009808
    %v219 = vunpack.c.0.s8 %v218
    %v220 = vlaneseq
    %v221 = vshrl.u32 %v220, 7
    %v222 = vsub.s32 %v219, %v221
    %v223 = vrot.slane %v215, %v222
    %v225 = vunpack.c.l.s4 1983009808
    %v226 = vunpack.c.0.s8 %v225
    %v227 = vlaneseq
    %v228 = vshrl.u32 %v227, 7
    %v229 = vsub.s32 %v226, %v228
    %v230 = vrot.slane %v216, %v229
    %v231 = vcombine.low %v175, %v191
    %v232 = vcombine.high %v175, %v191
    %v234 = vunpack.c.l.s4 1934713408
    %v235 = vunpack.c.0.s8 %v234
    %v236 = vlaneseq
    %v237 = vshrl.u32 %v236, 7
    %v238 = vsub.s32 %v235, %v237
    %v239 = vrot.slane %v231, %v238
    %v241 = vunpack.c.l.s4 1934713408
    %v242 = vunpack.c.0.s8 %v241
    %v243 = vlaneseq
    %v244 = vshrl.u32 %v243, 7
    %v245 = vsub.s32 %v242, %v244
    %v246 = vrot.slane %v232, %v245
    %v247 = vcombine.low %v182, %v198
    %v248 = vcombine.high %v182, %v198
    %v250 = vunpack.c.l.s4 1934713408
    %v251 = vunpack.c.0.s8 %v250
    %v252 = vlaneseq
    %v253 = vshrl.u32 %v252, 7
    %v254 = vsub.s32 %v251, %v253
    %v255 = vrot.slane %v247, %v254
    %v257 = vunpack.c.l.s4 1934713408
    %v258 = vunpack.c.0.s8 %v257
    %v259 = vlaneseq
    %v260 = vshrl.u32 %v259, 7
    %v261 = vsub.s32 %v258, %v260
    %v262 = vrot.slane %v248, %v261
    %v263 = vcombine.low %v207, %v223
    %v264 = vcombine.high %v207, %v223
    %v266 = vunpack.c.l.s4 1934713408
    %v267 = vunpack.c.0.s8 %v266
    %v268 = vlaneseq
    %v269 = vshrl.u32 %v268, 7
    %v270 = vsub.s32 %v267, %v269
    %v271 = vrot.slane %v263, %v270
    %v273 = vunpack.c.l.s4 1934713408
    %v274 = vunpack.c.0.s8 %v273
    %v275 = vlaneseq
    %v276 = vshrl.u32 %v275, 7
    %v277 = vsub.s32 %v274, %v276
    %v278 = vrot.slane %v264, %v277
    %v279 = vcombine.low %v214, %v230
    %v280 = vcombine.high %v214, %v230
    %v282 = vunpack.c.l.s4 1934713408
    %v283 = vunpack.c.0.s8 %v282
    %v284 = vlaneseq
    %v285 = vshrl.u32 %v284, 7
    %v286 = vsub.s32 %v283, %v285
    %v287 = vrot.slane %v279, %v286
    %v289 = vunpack.c.l.s4 1934713408
    %v290 = vunpack.c.0.s8 %v289
    %v291 = vlaneseq
    %v292 = vshrl.u32 %v291, 7
    %v293 = vsub.s32 %v290, %v292
    %v294 = vrot.slane %v280, %v293
    %v295 = vcombine.low %v239, %v271
    %v296 = vcombine.high %v239, %v271
    %v297 = vcombine.low %v246, %v278
    %v298 = vcombine.high %v246, %v278
    %v299 = vcombine.low %v255, %v287
    %v300 = vcombine.high %v255, %v287
    %v301 = vcombine.low %v262, %v294
    %v302 = vcombine.high %v262, %v294
    %vm303 = vcmask 261120
    %v305 = vsel %vm303, 0, 0
    %307 = vmatprep.subr.bf16.mxu0 0
    %308 = vmatpush1.bf16.msra.mxu0 0
    %309 = vmatprep.subr.bf16.mxu0 0
    %310 = vmatpush1.bf16.msra.mxu0 0
    %311 = vmatprep.subr.bf16.mxu0 0
    %312 = vmatpush1.bf16.msra.mxu0 0
    %313 = vmatprep.subr.bf16.mxu0 0
    %314 = vmatpush1.bf16.msra.mxu0 0
    %315 = vmatprep.subr.bf16.mxu0 0
    %316 = vmatpush1.bf16.msra.mxu0 0
    %317 = vmatprep.subr.bf16.mxu0 0
    %318 = vmatpush1.bf16.msra.mxu0 0
    %319 = vmatprep.subr.bf16.mxu0 0
    %320 = vmatpush1.bf16.msra.mxu0 %v49
    %321 = vmatprep.subr.bf16.mxu0 0
    %322 = vmatpush1.bf16.msra.mxu0 %v48
    %323 = vmatprep.subr.bf16.mxu0 0
    %324 = vmatpush2.bf16.msra.mxu0 0
    %325 = vmatprep.subr.bf16.mxu0 0
    %326 = vmatpush2.bf16.msra.mxu0 0
    %327 = vmatprep.subr.bf16.mxu0 0
    %328 = vmatpush2.bf16.msra.mxu0 0
    %329 = vmatprep.subr.bf16.mxu0 0
    %330 = vmatpush2.bf16.msra.mxu0 0
    %331 = vmatprep.subr.bf16.mxu0 0
    %332 = vmatpush2.bf16.msra.mxu0 0
    %333 = vmatprep.subr.bf16.mxu0 0
    %334 = vmatpush2.bf16.msra.mxu0 0
    %335 = vmatprep.subr.bf16.mxu0 0
    %336 = vmatpush2.bf16.msra.mxu0 0
    %337 = vmatprep.subr.bf16.mxu0 0
    %338 = vmatpush2.bf16.msra.mxu0 0
    %339 = vmatprep.mubr.bf16.mxu0 0
    %340 = vmatmul.mubr.bf16.gmra.mxu0 %v305
    %v341 = vpop.f32.mrf.mxu0
    %v342 = vadd.f32 %v295, %v341
    %v343 = vpop.f32.mrf.mxu0
    %v344 = vpop.f32.mrf.mxu0
    %v345 = vpop.f32.mrf.mxu0
    %346 = vdwg.mxu0
    %v347 = vtanh.pop %v342
    %v348 = vmul.f32 %v347, 0.5
    %v349 = vadd.f32 %v348, 0.5
    %v350 = vmul.f32 %v349, 0.0
    %352 = vrot.lane.b32.xlu0 %v347, 32
    %v353 = vpop.permute.xlu0 %352
    %v355 = vmul.f32 %v349, %v353
    %357 = vrot.lane.b32.xlu0 %v355, 32
    %v358 = vpop.permute.xlu0 %357
    %v360 = vadd.f32 %v350, %v358
    %v361 = vtanh.pop %v360
    %363 = vrot.lane.b32.xlu0 %v361, 32
    %v364 = vpop.permute.xlu0 %363
    %v366 = vmul.f32 %v349, %v364
    %v367 = vpack.c.bf16 %v366, %v366
    %369 = vrot.lane.b32.xlu0 %v367, 64
    %v370 = vpop.permute.xlu0 %369
    %v372 = vsel %vm303, %v370, 0
    %374 = vmatprep.subr.bf16.mxu0 0
    %375 = vmatpush1.bf16.msra.mxu0 0
    %376 = vmatprep.subr.bf16.mxu0 0
    %377 = vmatpush1.bf16.msra.mxu0 0
    %378 = vmatprep.subr.bf16.mxu0 0
    %379 = vmatpush1.bf16.msra.mxu0 0
    %380 = vmatprep.subr.bf16.mxu0 0
    %381 = vmatpush1.bf16.msra.mxu0 0
    %382 = vmatprep.subr.bf16.mxu0 0
    %383 = vmatpush1.bf16.msra.mxu0 0
    %384 = vmatprep.subr.bf16.mxu0 0
    %385 = vmatpush1.bf16.msra.mxu0 0
    %386 = vmatprep.subr.bf16.mxu0 0
    %387 = vmatpush1.bf16.msra.mxu0 %v49
    %388 = vmatprep.subr.bf16.mxu0 0
    %389 = vmatpush1.bf16.msra.mxu0 %v48
    %390 = vmatprep.subr.bf16.mxu0 0
    %391 = vmatpush2.bf16.msra.mxu0 0
    %392 = vmatprep.subr.bf16.mxu0 0
    %393 = vmatpush2.bf16.msra.mxu0 0
    %394 = vmatprep.subr.bf16.mxu0 0
    %395 = vmatpush2.bf16.msra.mxu0 0
    %396 = vmatprep.subr.bf16.mxu0 0
    %397 = vmatpush2.bf16.msra.mxu0 0
    %398 = vmatprep.subr.bf16.mxu0 0
    %399 = vmatpush2.bf16.msra.mxu0 0
    %400 = vmatprep.subr.bf16.mxu0 0
    %401 = vmatpush2.bf16.msra.mxu0 0
    %402 = vmatprep.subr.bf16.mxu0 0
    %403 = vmatpush2.bf16.msra.mxu0 0
    %404 = vmatprep.subr.bf16.mxu0 0
    %405 = vmatpush2.bf16.msra.mxu0 0
    %406 = vmatprep.mubr.bf16.mxu0 0
    %407 = vmatmul.mubr.bf16.gmra.mxu0 %v372
    %v408 = vpop.f32.mrf.mxu0
    %v409 = vadd.f32 %v296, %v408
    %v410 = vpop.f32.mrf.mxu0
    %v411 = vpop.f32.mrf.mxu0
    %v412 = vpop.f32.mrf.mxu0
    %413 = vdwg.mxu0
    %v414 = vtanh.pop %v409
    %v415 = vmul.f32 %v414, 0.5
    %v416 = vadd.f32 %v415, 0.5
    %v417 = vmul.f32 %v416, %v360
    %419 = vrot.lane.b32.xlu0 %v414, 32
    %v420 = vpop.permute.xlu0 %419
    %v422 = vmul.f32 %v416, %v420
    %424 = vrot.lane.b32.xlu0 %v422, 32
    %v425 = vpop.permute.xlu0 %424
    %v427 = vadd.f32 %v417, %v425
    %v428 = vtanh.pop %v427
    %430 = vrot.lane.b32.xlu0 %v428, 32
    %v431 = vpop.permute.xlu0 %430
    %v433 = vmul.f32 %v416, %v431
    %v434 = vpack.c.bf16 %v433, %v433
    %436 = vrot.lane.b32.xlu0 %v434, 64
    %v437 = vpop.permute.xlu0 %436
    %v439 = vsel %vm303, %v437, 0
    %441 = vmatprep.subr.bf16.mxu0 0
    %442 = vmatpush1.bf16.msra.mxu0 0
    %443 = vmatprep.subr.bf16.mxu0 0
    %444 = vmatpush1.bf16.msra.mxu0 0
    %445 = vmatprep.subr.bf16.mxu0 0
    %446 = vmatpush1.bf16.msra.mxu0 0
    %447 = vmatprep.subr.bf16.mxu0 0
    %448 = vmatpush1.bf16.msra.mxu0 0
    %449 = vmatprep.subr.bf16.mxu0 0
    %450 = vmatpush1.bf16.msra.mxu0 0
    %451 = vmatprep.subr.bf16.mxu0 0
    %452 = vmatpush1.bf16.msra.mxu0 0
    %453 = vmatprep.subr.bf16.mxu0 0
    %454 = vmatpush1.bf16.msra.mxu0 %v49
    %455 = vmatprep.subr.bf16.mxu0 0
    %456 = vmatpush1.bf16.msra.mxu0 %v48
    %457 = vmatprep.subr.bf16.mxu0 0
    %458 = vmatpush2.bf16.msra.mxu0 0
    %459 = vmatprep.subr.bf16.mxu0 0
    %460 = vmatpush2.bf16.msra.mxu0 0
    %461 = vmatprep.subr.bf16.mxu0 0
    %462 = vmatpush2.bf16.msra.mxu0 0
    %463 = vmatprep.subr.bf16.mxu0 0
    %464 = vmatpush2.bf16.msra.mxu0 0
    %465 = vmatprep.subr.bf16.mxu0 0
    %466 = vmatpush2.bf16.msra.mxu0 0
    %467 = vmatprep.subr.bf16.mxu0 0
    %468 = vmatpush2.bf16.msra.mxu0 0
    %469 = vmatprep.subr.bf16.mxu0 0
    %470 = vmatpush2.bf16.msra.mxu0 0
    %471 = vmatprep.subr.bf16.mxu0 0
    %472 = vmatpush2.bf16.msra.mxu0 0
    %473 = vmatprep.mubr.bf16.mxu0 0
    %474 = vmatmul.mubr.bf16.gmra.mxu0 %v439
    %v475 = vpop.f32.mrf.mxu0
    %v476 = vadd.f32 %v297, %v475
    %v477 = vpop.f32.mrf.mxu0
    %v478 = vpop.f32.mrf.mxu0
    %v479 = vpop.f32.mrf.mxu0
    %480 = vdwg.mxu0
    %v481 = vtanh.pop %v476
    %v482 = vmul.f32 %v481, 0.5
    %v483 = vadd.f32 %v482, 0.5
    %v484 = vmul.f32 %v483, %v427
    %486 = vrot.lane.b32.xlu0 %v481, 32
    %v487 = vpop.permute.xlu0 %486
    %v489 = vmul.f32 %v483, %v487
    %491 = vrot.lane.b32.xlu0 %v489, 32
    %v492 = vpop.permute.xlu0 %491
    %v494 = vadd.f32 %v484, %v492
    %v495 = vtanh.pop %v494
    %497 = vrot.lane.b32.xlu0 %v495, 32
    %v498 = vpop.permute.xlu0 %497
    %v500 = vmul.f32 %v483, %v498
    %v501 = vpack.c.bf16 %v500, %v500
    %503 = vrot.lane.b32.xlu0 %v501, 64
    %v504 = vpop.permute.xlu0 %503
    %v506 = vsel %vm303, %v504, 0
    %508 = vmatprep.subr.bf16.mxu0 0
    %509 = vmatpush1.bf16.msra.mxu0 0
    %510 = vmatprep.subr.bf16.mxu0 0
    %511 = vmatpush1.bf16.msra.mxu0 0
    %512 = vmatprep.subr.bf16.mxu0 0
    %513 = vmatpush1.bf16.msra.mxu0 0
    %514 = vmatprep.subr.bf16.mxu0 0
    %515 = vmatpush1.bf16.msra.mxu0 0
    %516 = vmatprep.subr.bf16.mxu0 0
    %517 = vmatpush1.bf16.msra.mxu0 0
    %518 = vmatprep.subr.bf16.mxu0 0
    %519 = vmatpush1.bf16.msra.mxu0 0
    %520 = vmatprep.subr.bf16.mxu0 0
    %521 = vmatpush1.bf16.msra.mxu0 %v49
    %522 = vmatprep.subr.bf16.mxu0 0
    %523 = vmatpush1.bf16.msra.mxu0 %v48
    %524 = vmatprep.subr.bf16.mxu0 0
    %525 = vmatpush2.bf16.msra.mxu0 0
    %526 = vmatprep.subr.bf16.mxu0 0
    %527 = vmatpush2.bf16.msra.mxu0 0
    %528 = vmatprep.subr.bf16.mxu0 0
    %529 = vmatpush2.bf16.msra.mxu0 0
    %530 = vmatprep.subr.bf16.mxu0 0
    %531 = vmatpush2.bf16.msra.mxu0 0
    %532 = vmatprep.subr.bf16.mxu0 0
    %533 = vmatpush2.bf16.msra.mxu0 0
    %534 = vmatprep.subr.bf16.mxu0 0
    %535 = vmatpush2.bf16.msra.mxu0 0
    %536 = vmatprep.subr.bf16.mxu0 0
    %537 = vmatpush2.bf16.msra.mxu0 0
    %538 = vmatprep.subr.bf16.mxu0 0
    %539 = vmatpush2.bf16.msra.mxu0 0
    %540 = vmatprep.mubr.bf16.mxu0 0
    %541 = vmatmul.mubr.bf16.gmra.mxu0 %v506
    %v542 = vpop.f32.mrf.mxu0
    %v543 = vadd.f32 %v298, %v542
    %v544 = vpop.f32.mrf.mxu0
    %v545 = vpop.f32.mrf.mxu0
    %v546 = vpop.f32.mrf.mxu0
    %547 = vdwg.mxu0
    %v548 = vtanh.pop %v543
    %v549 = vmul.f32 %v548, 0.5
    %v550 = vadd.f32 %v549, 0.5
    %v551 = vmul.f32 %v550, %v494
    %553 = vrot.lane.b32.xlu0 %v548, 32
    %v554 = vpop.permute.xlu0 %553
    %v556 = vmul.f32 %v550, %v554
    %558 = vrot.lane.b32.xlu0 %v556, 32
    %v559 = vpop.permute.xlu0 %558
    %v561 = vadd.f32 %v551, %v559
    %v562 = vtanh.pop %v561
    %564 = vrot.lane.b32.xlu0 %v562, 32
    %v565 = vpop.permute.xlu0 %564
    %v567 = vmul.f32 %v550, %v565
    %v568 = vpack.c.bf16 %v567, %v567
    %570 = vrot.lane.b32.xlu0 %v568, 64
    %v571 = vpop.permute.xlu0 %570
    %v573 = vsel %vm303, %v571, 0
    %575 = vmatprep.subr.bf16.mxu0 0
    %576 = vmatpush1.bf16.msra.mxu0 0
    %577 = vmatprep.subr.bf16.mxu0 0
    %578 = vmatpush1.bf16.msra.mxu0 0
    %579 = vmatprep.subr.bf16.mxu0 0
    %580 = vmatpush1.bf16.msra.mxu0 0
    %581 = vmatprep.subr.bf16.mxu0 0
    %582 = vmatpush1.bf16.msra.mxu0 0
    %583 = vmatprep.subr.bf16.mxu0 0
    %584 = vmatpush1.bf16.msra.mxu0 0
    %585 = vmatprep.subr.bf16.mxu0 0
    %586 = vmatpush1.bf16.msra.mxu0 0
    %587 = vmatprep.subr.bf16.mxu0 0
    %588 = vmatpush1.bf16.msra.mxu0 %v49
    %589 = vmatprep.subr.bf16.mxu0 0
    %590 = vmatpush1.bf16.msra.mxu0 %v48
    %591 = vmatprep.subr.bf16.mxu0 0
    %592 = vmatpush2.bf16.msra.mxu0 0
    %593 = vmatprep.subr.bf16.mxu0 0
    %594 = vmatpush2.bf16.msra.mxu0 0
    %595 = vmatprep.subr.bf16.mxu0 0
    %596 = vmatpush2.bf16.msra.mxu0 0
    %597 = vmatprep.subr.bf16.mxu0 0
    %598 = vmatpush2.bf16.msra.mxu0 0
    %599 = vmatprep.subr.bf16.mxu0 0
    %600 = vmatpush2.bf16.msra.mxu0 0
    %601 = vmatprep.subr.bf16.mxu0 0
    %602 = vmatpush2.bf16.msra.mxu0 0
    %603 = vmatprep.subr.bf16.mxu0 0
    %604 = vmatpush2.bf16.msra.mxu0 0
    %605 = vmatprep.subr.bf16.mxu0 0
    %606 = vmatpush2.bf16.msra.mxu0 0
    %607 = vmatprep.mubr.bf16.mxu0 0
    %608 = vmatmul.mubr.bf16.gmra.mxu0 %v573
    %v609 = vpop.f32.mrf.mxu0
    %v610 = vadd.f32 %v299, %v609
    %v611 = vpop.f32.mrf.mxu0
    %v612 = vpop.f32.mrf.mxu0
    %v613 = vpop.f32.mrf.mxu0
    %614 = vdwg.mxu0
    %v615 = vtanh.pop %v610
    %v616 = vmul.f32 %v615, 0.5
    %v617 = vadd.f32 %v616, 0.5
    %v618 = vmul.f32 %v617, %v561
    %620 = vrot.lane.b32.xlu0 %v615, 32
    %v621 = vpop.permute.xlu0 %620
    %v623 = vmul.f32 %v617, %v621
    %625 = vrot.lane.b32.xlu0 %v623, 32
    %v626 = vpop.permute.xlu0 %625
    %v628 = vadd.f32 %v618, %v626
    %v629 = vtanh.pop %v628
    %631 = vrot.lane.b32.xlu0 %v629, 32
    %v632 = vpop.permute.xlu0 %631
    %v634 = vmul.f32 %v617, %v632
    %v635 = vpack.c.bf16 %v634, %v634
    %637 = vrot.lane.b32.xlu0 %v635, 64
    %v638 = vpop.permute.xlu0 %637
    %v640 = vsel %vm303, %v638, 0
    %642 = vmatprep.subr.bf16.mxu0 0
    %643 = vmatpush1.bf16.msra.mxu0 0
    %644 = vmatprep.subr.bf16.mxu0 0
    %645 = vmatpush1.bf16.msra.mxu0 0
    %646 = vmatprep.subr.bf16.mxu0 0
    %647 = vmatpush1.bf16.msra.mxu0 0
    %648 = vmatprep.subr.bf16.mxu0 0
    %649 = vmatpush1.bf16.msra.mxu0 0
    %650 = vmatprep.subr.bf16.mxu0 0
    %651 = vmatpush1.bf16.msra.mxu0 0
    %652 = vmatprep.subr.bf16.mxu0 0
    %653 = vmatpush1.bf16.msra.mxu0 0
    %654 = vmatprep.subr.bf16.mxu0 0
    %655 = vmatpush1.bf16.msra.mxu0 %v49
    %656 = vmatprep.subr.bf16.mxu0 0
    %657 = vmatpush1.bf16.msra.mxu0 %v48
    %658 = vmatprep.subr.bf16.mxu0 0
    %659 = vmatpush2.bf16.msra.mxu0 0
    %660 = vmatprep.subr.bf16.mxu0 0
    %661 = vmatpush2.bf16.msra.mxu0 0
    %662 = vmatprep.subr.bf16.mxu0 0
    %663 = vmatpush2.bf16.msra.mxu0 0
    %664 = vmatprep.subr.bf16.mxu0 0
    %665 = vmatpush2.bf16.msra.mxu0 0
    %666 = vmatprep.subr.bf16.mxu0 0
    %667 = vmatpush2.bf16.msra.mxu0 0
    %668 = vmatprep.subr.bf16.mxu0 0
    %669 = vmatpush2.bf16.msra.mxu0 0
    %670 = vmatprep.subr.bf16.mxu0 0
    %671 = vmatpush2.bf16.msra.mxu0 0
    %672 = vmatprep.subr.bf16.mxu0 0
    %673 = vmatpush2.bf16.msra.mxu0 0
    %674 = vmatprep.mubr.bf16.mxu0 0
    %675 = vmatmul.mubr.bf16.gmra.mxu0 %v640
    %v676 = vpop.f32.mrf.mxu0
    %v677 = vadd.f32 %v300, %v676
    %v678 = vpop.f32.mrf.mxu0
    %v679 = vpop.f32.mrf.mxu0
    %v680 = vpop.f32.mrf.mxu0
    %681 = vdwg.mxu0
    %v682 = vtanh.pop %v677
    %v683 = vmul.f32 %v682, 0.5
    %v684 = vadd.f32 %v683, 0.5
    %v685 = vmul.f32 %v684, %v628
    %687 = vrot.lane.b32.xlu0 %v682, 32
    %v688 = vpop.permute.xlu0 %687
    %v690 = vmul.f32 %v684, %v688
    %692 = vrot.lane.b32.xlu0 %v690, 32
    %v693 = vpop.permute.xlu0 %692
    %v695 = vadd.f32 %v685, %v693
    %v696 = vtanh.pop %v695
    %698 = vrot.lane.b32.xlu0 %v696, 32
    %v699 = vpop.permute.xlu0 %698
    %v701 = vmul.f32 %v684, %v699
    %v702 = vpack.c.bf16 %v701, %v701
    %704 = vrot.lane.b32.xlu0 %v702, 64
    %v705 = vpop.permute.xlu0 %704
    %v707 = vsel %vm303, %v705, 0
    %709 = vmatprep.subr.bf16.mxu0 0
    %710 = vmatpush1.bf16.msra.mxu0 0
    %711 = vmatprep.subr.bf16.mxu0 0
    %712 = vmatpush1.bf16.msra.mxu0 0
    %713 = vmatprep.subr.bf16.mxu0 0
    %714 = vmatpush1.bf16.msra.mxu0 0
    %715 = vmatprep.subr.bf16.mxu0 0
    %716 = vmatpush1.bf16.msra.mxu0 0
    %717 = vmatprep.subr.bf16.mxu0 0
    %718 = vmatpush1.bf16.msra.mxu0 0
    %719 = vmatprep.subr.bf16.mxu0 0
    %720 = vmatpush1.bf16.msra.mxu0 0
    %721 = vmatprep.subr.bf16.mxu0 0
    %722 = vmatpush1.bf16.msra.mxu0 %v49
    %723 = vmatprep.subr.bf16.mxu0 0
    %724 = vmatpush1.bf16.msra.mxu0 %v48
    %725 = vmatprep.subr.bf16.mxu0 0
    %726 = vmatpush2.bf16.msra.mxu0 0
    %727 = vmatprep.subr.bf16.mxu0 0
    %728 = vmatpush2.bf16.msra.mxu0 0
    %729 = vmatprep.subr.bf16.mxu0 0
    %730 = vmatpush2.bf16.msra.mxu0 0
    %731 = vmatprep.subr.bf16.mxu0 0
    %732 = vmatpush2.bf16.msra.mxu0 0
    %733 = vmatprep.subr.bf16.mxu0 0
    %734 = vmatpush2.bf16.msra.mxu0 0
    %735 = vmatprep.subr.bf16.mxu0 0
    %736 = vmatpush2.bf16.msra.mxu0 0
    %737 = vmatprep.subr.bf16.mxu0 0
    %738 = vmatpush2.bf16.msra.mxu0 0
    %739 = vmatprep.subr.bf16.mxu0 0
    %740 = vmatpush2.bf16.msra.mxu0 0
    %741 = vmatprep.mubr.bf16.mxu0 0
    %742 = vmatmul.mubr.bf16.gmra.mxu0 %v707
    %v743 = vpop.f32.mrf.mxu0
    %v744 = vadd.f32 %v301, %v743
    %v745 = vpop.f32.mrf.mxu0
    %v746 = vpop.f32.mrf.mxu0
    %v747 = vpop.f32.mrf.mxu0
    %748 = vdwg.mxu0
    %v749 = vtanh.pop %v744
    %v750 = vmul.f32 %v749, 0.5
    %v751 = vadd.f32 %v750, 0.5
    %v752 = vmul.f32 %v751, %v695
    %754 = vrot.lane.b32.xlu0 %v749, 32
    %v755 = vpop.permute.xlu0 %754
    %v757 = vmul.f32 %v751, %v755
    %759 = vrot.lane.b32.xlu0 %v757, 32
    %v760 = vpop.permute.xlu0 %759
    %v762 = vadd.f32 %v752, %v760
    %v763 = vtanh.pop %v762
    %765 = vrot.lane.b32.xlu0 %v763, 32
    %v766 = vpop.permute.xlu0 %765
    %v768 = vmul.f32 %v751, %v766
    %v769 = vpack.c.bf16 %v768, %v768
    %771 = vrot.lane.b32.xlu0 %v769, 64
    %v772 = vpop.permute.xlu0 %771
    %v774 = vsel %vm303, %v772, 0
    %776 = vmatprep.subr.bf16.mxu0 0
    %777 = vmatpush1.bf16.msra.mxu0 0
    %778 = vmatprep.subr.bf16.mxu0 0
    %779 = vmatpush1.bf16.msra.mxu0 0
    %780 = vmatprep.subr.bf16.mxu0 0
    %781 = vmatpush1.bf16.msra.mxu0 0
    %782 = vmatprep.subr.bf16.mxu0 0
    %783 = vmatpush1.bf16.msra.mxu0 0
    %784 = vmatprep.subr.bf16.mxu0 0
    %785 = vmatpush1.bf16.msra.mxu0 0
    %786 = vmatprep.subr.bf16.mxu0 0
    %787 = vmatpush1.bf16.msra.mxu0 0
    %788 = vmatprep.subr.bf16.mxu0 0
    %789 = vmatpush1.bf16.msra.mxu0 %v49
    %790 = vmatprep.subr.bf16.mxu0 0
    %791 = vmatpush1.bf16.msra.mxu0 %v48
    %792 = vmatprep.subr.bf16.mxu0 0
    %793 = vmatpush2.bf16.msra.mxu0 0
    %794 = vmatprep.subr.bf16.mxu0 0
    %795 = vmatpush2.bf16.msra.mxu0 0
    %796 = vmatprep.subr.bf16.mxu0 0
    %797 = vmatpush2.bf16.msra.mxu0 0
    %798 = vmatprep.subr.bf16.mxu0 0
    %799 = vmatpush2.bf16.msra.mxu0 0
    %800 = vmatprep.subr.bf16.mxu0 0
    %801 = vmatpush2.bf16.msra.mxu0 0
    %802 = vmatprep.subr.bf16.mxu0 0
    %803 = vmatpush2.bf16.msra.mxu0 0
    %804 = vmatprep.subr.bf16.mxu0 0
    %805 = vmatpush2.bf16.msra.mxu0 0
    %806 = vmatprep.subr.bf16.mxu0 0
    %807 = vmatpush2.bf16.msra.mxu0 0
    %808 = vmatprep.mubr.bf16.mxu0 0
    %809 = vmatmul.mubr.bf16.gmra.mxu0 %v774
    %v810 = vpop.f32.mrf.mxu0
    %v811 = vadd.f32 %v302, %v810
    %v812 = vpop.f32.mrf.mxu0
    %v813 = vpop.f32.mrf.mxu0
    %v814 = vpop.f32.mrf.mxu0
    %815 = vdwg.mxu0
    %v816 = vtanh.pop %v811
    %v817 = vmul.f32 %v816, 0.5
    %v818 = vadd.f32 %v817, 0.5
    %v819 = vmul.f32 %v818, %v762
    %821 = vrot.lane.b32.xlu0 %v816, 32
    %v822 = vpop.permute.xlu0 %821
    %v824 = vmul.f32 %v818, %v822
    %826 = vrot.lane.b32.xlu0 %v824, 32
    %v827 = vpop.permute.xlu0 %826
    %v829 = vadd.f32 %v819, %v827
    %v830 = vtanh.pop %v829
    %832 = vrot.lane.b32.xlu0 %v830, 32
    %v833 = vpop.permute.xlu0 %832
    %v835 = vmul.f32 %v818, %v833
    %v836 = vpack.c.bf16 %v835, %v835
    %v837 = vlaneseq
    %v838 = vshrl.u32 %v837, 7
    %v839 = vsub.s32 0, %v838
    %v840 = vrot.slane %v57, %v839
    %842 = vrot.lane.b32.xlu0 %v836, 64
    %v843 = vpop.permute.xlu0 %842
    %v845 = vsel %vm303, %v843, 0
    %847 = vmatprep.subr.bf16.mxu0 0
    %848 = vmatpush1.bf16.msra.mxu0 0
    %849 = vmatprep.subr.bf16.mxu0 0
    %850 = vmatpush1.bf16.msra.mxu0 0
    %851 = vmatprep.subr.bf16.mxu0 0
    %852 = vmatpush1.bf16.msra.mxu0 0
    %853 = vmatprep.subr.bf16.mxu0 0
    %854 = vmatpush1.bf16.msra.mxu0 0
    %855 = vmatprep.subr.bf16.mxu0 0
    %856 = vmatpush1.bf16.msra.mxu0 0
    %857 = vmatprep.subr.bf16.mxu0 0
    %858 = vmatpush1.bf16.msra.mxu0 0
    %859 = vmatprep.subr.bf16.mxu0 0
    %860 = vmatpush1.bf16.msra.mxu0 %v56
    %861 = vmatprep.subr.bf16.mxu0 0
    %862 = vmatpush1.bf16.msra.mxu0 %v55
    %863 = vmatprep.subr.bf16.mxu0 0
    %864 = vmatpush2.bf16.msra.mxu0 0
    %865 = vmatprep.subr.bf16.mxu0 0
    %866 = vmatpush2.bf16.msra.mxu0 0
    %867 = vmatprep.subr.bf16.mxu0 0
    %868 = vmatpush2.bf16.msra.mxu0 0
    %869 = vmatprep.subr.bf16.mxu0 0
    %870 = vmatpush2.bf16.msra.mxu0 0
    %871 = vmatprep.subr.bf16.mxu0 0
    %872 = vmatpush2.bf16.msra.mxu0 0
    %873 = vmatprep.subr.bf16.mxu0 0
    %874 = vmatpush2.bf16.msra.mxu0 0
    %875 = vmatprep.subr.bf16.mxu0 0
    %876 = vmatpush2.bf16.msra.mxu0 0
    %877 = vmatprep.subr.bf16.mxu0 0
    %878 = vmatpush2.bf16.msra.mxu0 0
    %879 = vmatprep.mubr.bf16.mxu0 0
    %880 = vmatmul.mubr.bf16.gmra.mxu0 %v845
    %v881 = vpop.f32.mrf.mxu0
    %v882 = vadd.f32 %v840, %v881
    %v883 = vpop.f32.mrf.mxu0
    %v884 = vpop.f32.mrf.mxu0
    %v885 = vpop.f32.mrf.mxu0
    %886 = vdwg.mxu0
    %v887 = vmax.f32 %v882, 0.0
    %v888 = vpack.c.bf16 %v887, %v887
    %v889 = vlaneseq
    %v890 = vshrl.u32 %v889, 7
    %v891 = vsub.s32 0, %v890
    %v892 = vrot.slane %v82, %v891
    %893 = vmatprep.subr.bf16.mxu0 0
    %894 = vmatpush1.bf16.msra.mxu0 %v81
    %895 = vmatprep.subr.bf16.mxu0 0
    %896 = vmatpush1.bf16.msra.mxu0 %v80
    %897 = vmatprep.subr.bf16.mxu0 0
    %898 = vmatpush1.bf16.msra.mxu0 %v79
    %899 = vmatprep.subr.bf16.mxu0 0
    %900 = vmatpush1.bf16.msra.mxu0 %v78
    %901 = vmatprep.subr.bf16.mxu0 0
    %902 = vmatpush1.bf16.msra.mxu0 %v77
    %903 = vmatprep.subr.bf16.mxu0 0
    %904 = vmatpush1.bf16.msra.mxu0 %v76
    %905 = vmatprep.subr.bf16.mxu0 0
    %906 = vmatpush1.bf16.msra.mxu0 %v75
    %907 = vmatprep.subr.bf16.mxu0 0
    %908 = vmatpush1.bf16.msra.mxu0 %v74
    %909 = vmatprep.subr.bf16.mxu0 0
    %910 = vmatpush2.bf16.msra.mxu0 0
    %911 = vmatprep.subr.bf16.mxu0 0
    %912 = vmatpush2.bf16.msra.mxu0 0
    %913 = vmatprep.subr.bf16.mxu0 0
    %914 = vmatpush2.bf16.msra.mxu0 0
    %915 = vmatprep.subr.bf16.mxu0 0
    %916 = vmatpush2.bf16.msra.mxu0 0
    %917 = vmatprep.subr.bf16.mxu0 0
    %918 = vmatpush2.bf16.msra.mxu0 0
    %919 = vmatprep.subr.bf16.mxu0 0
    %920 = vmatpush2.bf16.msra.mxu0 0
    %921 = vmatprep.subr.bf16.mxu0 0
    %922 = vmatpush2.bf16.msra.mxu0 0
    %923 = vmatprep.subr.bf16.mxu0 0
    %924 = vmatpush2.bf16.msra.mxu0 0
    %925 = vmatprep.mubr.bf16.mxu0 0
    %926 = vmatmul.mubr.bf16.gmra.mxu0 %v888
    %v927 = vpop.f32.mrf.mxu0
    %v928 = vadd.f32 %v892, %v927
    %v929 = vpop.f32.mrf.mxu0
    %v930 = vpop.f32.mrf.mxu0
    %v931 = vpop.f32.mrf.mxu0
    %932 = vdwg.mxu0
    %vm933 = vcmask 9216
    %934 = vst.msk [vmem:[#allocation7] sm:$0x3] %vm933, %v928
    // Predicated region
    $region18: #{tpu_custom_call.1} parent=1 // pred_check
      _
    $region19: #{tpu_custom_call.1} parent=1 // pred_check_branch
      %936 = sbr.rel (0) target = $region21
    $region20: #{tpu_custom_call.1} parent=1 // pred_region
      %s938 = ssub.s32 32, 32
      %939 = vsyncadd [#allocation4], %s938
      %s941 = sshll.u32 [#allocation7], 4
      %s942 = int_to_ptr.vmem [resolvable:$true] %s941
      %944 = dma.vmem_to_hbm [thread:$0]  %s942, 32, %s2, [#allocation4]
    $region21: #{tpu_custom_call.1} parent=1 // pred_fallthru
      _
    // Predicated region
    $region22: #{tpu_custom_call.1} parent=1 // pred_check
      _
    $region23: #{tpu_custom_call.1} parent=1 // pred_check_branch
      %946 = sbr.rel (0) target = $region25
    $region24: #{tpu_custom_call.1} parent=1 // pred_region
      %947 = dma.done [#allocation4], 32
    $region25: #{tpu_custom_call.1} parent=1 // pred_fallthru
      _
    %948 = vsyncpa [#allocation3], 1
    %949 = vsyncpa [#allocation6], 1
    %950 = vsyncpa [#allocation4], 1

</llo_original>
